<compile_context>
chip_gen: v7x
topology: tpu7x:2x2x1
jax: 0.10.0
libtpu: 0.0.40
codegen_flags: <defaults>
</compile_context>

<pallas_src>
import jax
import jax.numpy as jnp
from jax.experimental import pallas as pl
from jax.experimental.pallas import tpu as pltpu

_LANE = 128
# In+out blocks, double buffered. Conservative for v7x (64 MiB physical / 32 MiB
# default scoped VMEM) and well under v5e's 16 MiB default scoped limit.
_VMEM_BUDGET_BYTES = 8 * 1024 * 1024
# Pack batches per block until each grid step moves at least this much data.
_MIN_STEP_BYTES = 512 * 1024


def _max_fusion_kernel(x_ref, o_ref):
    # x_ref: (Bt, Ct, Rt, 128) block; o_ref: (Bt, Rt, 128) block.
    # Channel axis (axis=1) is non-minor -> reduce is back-to-back vmax on the VPU.
    part = jnp.max(x_ref[...], axis=1)

    @pl.when(pl.program_id(2) == 0)
    def _init():
        o_ref[...] = part

    @pl.when(pl.program_id(2) != 0)
    def _accum():
        # Output block is resident across the "arbitrary" channel-tile axis.
        o_ref[...] = jnp.maximum(o_ref[...], part)


def _sublane(itemsize):
    # Sub-32-bit dtypes pack along sublanes: bf16 -> 16, int8/fp8 -> 32.
    return {4: 8, 2: 16, 1: 32}.get(itemsize, 8)


def _pad_value(dtype):
    # Channel padding must never win the max; spatial padding is sliced away.
    if jnp.issubdtype(dtype, jnp.floating):
        return float("-inf")
    return int(jnp.iinfo(dtype).min)


def _choose_tiles(B, C, rows_total, itemsize, budget, min_step_bytes):
    sub = _sublane(itemsize)

    def step_bytes(bt, ct, rt):
        # input block + output block, each double-buffered.
        return 2 * bt * rt * _LANE * itemsize * (ct + 1)

    min_rt = min(sub, rows_total)

    # 1) Try keeping the full channel axis in one block; tile rows to fit budget.
    ct = C
    rt_cap = budget // (2 * _LANE * itemsize * (C + 1))
    if rt_cap >= rows_total:
        rt = rows_total                      # full spatial extent per step
    elif rt_cap >= min_rt:
        rt = max(min_rt, (rt_cap // sub) * sub)
    else:
        # 2) C is very large: tile the channel axis too (grid reduction axis).
        rt = min_rt
        ct = max(1, min(C, budget // (2 * rt * _LANE * itemsize) - 1))

    # 3) Pack multiple batch images per block while steps are tiny (amortize the
    #    ~0.35us fixed per-step overhead). Bt must divide B.
    bt = 1
    while (bt < B
           and B % (2 * bt) == 0
           and step_bytes(2 * bt, ct, rt) <= budget
           and step_bytes(bt, ct, rt) < min_step_bytes):
        bt *= 2

    return bt, ct, rt


def max_fusion(x: jax.Array,
               *,
               vmem_budget_bytes: int = _VMEM_BUDGET_BYTES,
               min_step_bytes: int = _MIN_STEP_BYTES) -> jax.Array:
    """out[b, h, w] = max over c of x[b, c, h, w]."""
    B, C, H, W = x.shape
    HW = H * W
    dtype = x.dtype
    itemsize = jnp.dtype(dtype).itemsize

    rows_total = pl.cdiv(HW, _LANE)
    bt, ct, rt = _choose_tiles(B, C, rows_total, itemsize,
                               vmem_budget_bytes, min_step_bytes)

    rows_padded = pl.cdiv(rows_total, rt) * rt
    hw_padded = rows_padded * _LANE
    c_padded = pl.cdiv(C, ct) * ct

    # Flatten spatial dims -> lane-dense last dim (multiple of 128).
    xf = x.reshape(B, C, HW)
    if hw_padded != HW or c_padded != C:
        xf = jnp.pad(
            xf,
            ((0, 0), (0, c_padded - C), (0, hw_padded - HW)),
            constant_values=_pad_value(dtype),
        )
    x4 = xf.reshape(B, c_padded, rows_padded, _LANE)

    grid = (B // bt, rows_padded // rt, c_padded // ct)

    out4 = pl.pallas_call(
        _max_fusion_kernel,
        out_shape=jax.ShapeDtypeStruct((B, rows_padded, _LANE), dtype),
        grid_spec=pltpu.PrefetchScalarGridSpec(
            num_scalar_prefetch=0,
            grid=grid,
            in_specs=[
                pl.BlockSpec((bt, ct, rt, _LANE), lambda b, r, c: (b, c, r, 0)),
            ],
            out_specs=pl.BlockSpec((bt, rt, _LANE), lambda b, r, c: (b, r, 0)),
        ),
        compiler_params=pltpu.CompilerParams(
            dimension_semantics=("parallel", "parallel", "arbitrary"),
        ),
    )(x4)

    return out4.reshape(B, hw_padded)[:, :HW].reshape(B, H, W)


def max_fusion_ref(x: jax.Array) -> jax.Array:
    # Pure-JAX reference (matches torch.stack([img.max(0)[0] for img in x])).
    return jnp.max(x, axis=1)


if __name__ == "__main__":
    key = jax.random.PRNGKey(0)
    k1, k2, k3 = jax.random.split(key, 3)

    # Primary shape implied by the module (small NCHW).
    x1 = jax.random.normal(k1, (2, 4, 16, 16), dtype=jnp.float32)
    out1 = max_fusion(x1)
    jax.block_until_ready(out1)
    assert out1.shape == (2, 16, 16), out1.shape
    assert jnp.array_equal(out1, max_fusion_ref(x1)), "mismatch (primary shape)"

    # Non-128-divisible spatial extent + odd channel count (exercises padding path).
    x2 = jax.random.normal(k2, (2, 3, 20, 30), dtype=jnp.float32)
    out2 = max_fusion(x2)
    jax.block_until_ready(out2)
    assert jnp.array_equal(out2, max_fusion_ref(x2)), "mismatch (padded shape)"

    # Tiny budget to force spatial-tile + channel-tile (accumulator) grid paths.
    x3 = jax.random.normal(k3, (2, 4, 40, 48), dtype=jnp.float32)
    out3 = max_fusion(x3, vmem_budget_bytes=16 * 1024)
    jax.block_until_ready(out3)
    assert jnp.array_equal(out3, max_fusion_ref(x3)), "mismatch (tiled path)"

    print("KERNEL_OK")
</pallas_src>

<mosaic_0001>
module attributes {stable_mosaic.version = 11 : i64} {
  func.func @_max_fusion_kernel(%arg0: i32, %arg1: i32, %arg2: i32, %arg3: memref<2x4x2x128xf32, #tpu.memory_space<vmem>>, %arg4: memref<2x2x128xf32, #tpu.memory_space<vmem>>) attributes {dimension_semantics = [#tpu.dimension_semantics<parallel>, #tpu.dimension_semantics<parallel>, #tpu.dimension_semantics<arbitrary>], iteration_bounds = array<i64: 1, 1, 1>, scalar_prefetch = 0 : i64, scratch_operands = 0 : i64, tpu.core_type = #tpu.core_type<tc>, window_params = [{transform_indices = @transform_0, window_bounds = array<i64: 2, 4, 2, 128>}, {transform_indices = @transform_1, window_bounds = array<i64: 2, 2, 128>}]} {
    %c0 = arith.constant 0 : index
    %c0_0 = arith.constant 0 : index
    %c0_1 = arith.constant 0 : index
    %c0_2 = arith.constant 0 : index
    %0 = vector.load %arg3[%c0, %c0_0, %c0_1, %c0_2] : memref<2x4x2x128xf32, #tpu.memory_space<vmem>>, vector<2x4x2x128xf32>
    %cst = arith.constant dense<0xFF800000> : vector<2x2x128xf32>
    %1 = vector.multi_reduction <maximumf>, %0, %cst [1] : vector<2x4x2x128xf32> to vector<2x2x128xf32>
    %c0_i32 = arith.constant 0 : i32
    %2 = arith.cmpi eq, %arg2, %c0_i32 : i32
    %3 = arith.extui %2 : i1 to i32
    %c0_i32_3 = arith.constant 0 : i32
    %4 = arith.cmpi ne, %3, %c0_i32_3 : i32
    scf.if %4 {
      %c0_6 = arith.constant 0 : index
      %c0_7 = arith.constant 0 : index
      %c0_8 = arith.constant 0 : index
      %8 = vector.load %arg4[%c0_6, %c0_7, %c0_8] : memref<2x2x128xf32, #tpu.memory_space<vmem>>, vector<2x2x128xf32>
      tpu.vector_store %arg4[%c0_6, %c0_7, %c0_8], %1 {strides = array<i32>} : memref<2x2x128xf32, #tpu.memory_space<vmem>>, vector<2x2x128xf32>,
    } else {
    }
    %c0_i32_4 = arith.constant 0 : i32
    %5 = arith.cmpi ne, %arg2, %c0_i32_4 : i32
    %6 = arith.extui %5 : i1 to i32
    %c0_i32_5 = arith.constant 0 : i32
    %7 = arith.cmpi ne, %6, %c0_i32_5 : i32
    scf.if %7 {
      %c0_6 = arith.constant 0 : index
      %c0_7 = arith.constant 0 : index
      %c0_8 = arith.constant 0 : index
      %8 = vector.load %arg4[%c0_6, %c0_7, %c0_8] : memref<2x2x128xf32, #tpu.memory_space<vmem>>, vector<2x2x128xf32>
      %9 = arith.maximumf %8, %1 : vector<2x2x128xf32>
      %c0_9 = arith.constant 0 : index
      %c0_10 = arith.constant 0 : index
      %c0_11 = arith.constant 0 : index
      %10 = vector.load %arg4[%c0_9, %c0_10, %c0_11] : memref<2x2x128xf32, #tpu.memory_space<vmem>>, vector<2x2x128xf32>
      tpu.vector_store %arg4[%c0_9, %c0_10, %c0_11], %9 {strides = array<i32>} : memref<2x2x128xf32, #tpu.memory_space<vmem>>, vector<2x2x128xf32>,
    } else {
    }
    return
  }
  func.func @transform_0(%arg0: i32, %arg1: i32, %arg2: i32) -> (i32, i32, i32, i32) {
    %c0_i32 = arith.constant 0 : i32
    %c0_i32_0 = arith.constant 0 : i32
    return %arg0, %arg2, %arg1, %c0_i32 : i32, i32, i32, i32
  }
  func.func @transform_1(%arg0: i32, %arg1: i32, %arg2: i32) -> (i32, i32, i32) {
    %c0_i32 = arith.constant 0 : i32
    %c0_i32_0 = arith.constant 0 : i32
    return %arg0, %arg1, %c0_i32 : i32, i32, i32
  }
}

</mosaic_0001>

<llo_original>
// kernel: tpu_custom_call.1
$region0: #{tpu_custom_call.1}
  #allocation0 [shape = 'u32[]', space=smem, size = 0x4, offset = 0x4, fixed_abs, tag = 'smem constant byte address 0x4 - core index']
  #allocation1 [shape = 'u32[144,128]{1,0:T(1,128)}', space=vmem, size = 0x12000, scoped, tag = 'internal scratch']
  %s0 = inlined_call_operand.hbm [shape: f32[2,4,2,128], index: 0, kind: input, shape index: {}]
  %s1 = inlined_call_operand.hbm [shape: f32[2,2,128], index: 1, kind: output, shape index: {}]
  %s2 = sld [smem:[#allocation0]]
  $region26: #{tpu_custom_call.1} parent=0
    _
  %s4 = ssub.s32 1, %s2
  %s5 = scalar_select 0, %s4, %s2
  $region1: #{tpu_custom_call.1} parent=0
    #allocation2 [shape = 'u8[8192]{0}', space=vmem, size = 0x2000, scoped, tag = 'input window, operand 0, single buffered']
    #allocation3 [shape = 's32[1]{0}', space=sflag, size = 0x4, scoped, tag = 'scoped memory for tpu_custom_call.1']
    #allocation4 [shape = 's32[1]{0}', space=sflag, size = 0x4, scoped, tag = 'scoped memory for tpu_custom_call.1']
    #allocation5 [shape = 'u8[2048]{0}', space=vmem, size = 0x800, scoped, tag = 'output window, operand 0, single buffered']
    %6 = vsyncpa [#allocation3], 0
    %7 = vsyncpa [#allocation4], 0
    // Predicated region
    $region2: #{tpu_custom_call.1} parent=1 // pred_check
      _
    $region3: #{tpu_custom_call.1} parent=1 // pred_check_branch
      %9 = sbr.rel (0) target = $region5
    $region4: #{tpu_custom_call.1} parent=1 // pred_region
      %s11 = ssub.s32 256, 256
      %12 = vsyncadd [#allocation3], %s11
      %s13 = sshll.u32 [#allocation2], 4
      %s14 = int_to_ptr.vmem [resolvable:$true] %s13
      %19 = dma.hbm_to_vmem [thread:$0]  %s0, 256, %s14, [#allocation3], 32, 32, 2
    $region5: #{tpu_custom_call.1} parent=1 // pred_fallthru
      _
    // Predicated region
    $region6: #{tpu_custom_call.1} parent=1 // pred_check
      _
    $region7: #{tpu_custom_call.1} parent=1 // pred_check_branch
      %21 = sbr.rel (0) target = $region9
    $region8: #{tpu_custom_call.1} parent=1 // pred_region
      %22 = dma.done [#allocation3], 256
    $region9: #{tpu_custom_call.1} parent=1 // pred_fallthru
      _
    %v23 = vld [vmem:[#allocation2] sm:$0x3]
    %v24 = vld [vmem:[#allocation2 + $0x2] sm:$0x3]
    %v25 = vld [vmem:[#allocation2 + $0x4] sm:$0x3]
    %v26 = vld [vmem:[#allocation2 + $0x6] sm:$0x3]
    %v27 = vld [vmem:[#allocation2 + $0x8] sm:$0x3]
    %v28 = vld [vmem:[#allocation2 + $0xa] sm:$0x3]
    %v29 = vld [vmem:[#allocation2 + $0xc] sm:$0x3]
    %v30 = vld [vmem:[#allocation2 + $0xe] sm:$0x3]
    %vm31 = vcmask 1041408
    %v32 = vsel %vm31, %v23, -inf
    %v33 = vsel %vm31, %v24, -inf
    %v34 = vsel %vm31, %v25, -inf
    %v35 = vmax.f32 %v32, %v34
    %v36 = vsel %vm31, %v26, -inf
    %v37 = vmax.f32 %v33, %v36
    %v38 = vmax.f32 %v35, %v37
    %v39 = vsel %vm31, %v27, -inf
    %v40 = vsel %vm31, %v28, -inf
    %v41 = vsel %vm31, %v29, -inf
    %v42 = vmax.f32 %v39, %v41
    %v43 = vsel %vm31, %v30, -inf
    %v44 = vmax.f32 %v40, %v43
    %v45 = vmax.f32 %v42, %v44
    %p46 = scmp.eq.s32.totalorder 0, 0
    // Predicated region
    $region10: #{tpu_custom_call.1} parent=1 // pred_check
      %p47 = pneg %p46
    $region11: #{tpu_custom_call.1} parent=1 // pred_check_branch
      %49 = sbr.rel (%p47) target = $region13
    $region12: #{tpu_custom_call.1} parent=1 // pred_region
      %50 = vst [vmem:[#allocation5] sm:$0x3] %v38
      %51 = vst [vmem:[#allocation5 + $0x2] sm:$0x3] %v45
    $region13: #{tpu_custom_call.1} parent=1 // pred_fallthru
      _
    %p52 = scmp.ne.s32.totalorder 0, 0
    // Predicated region
    $region14: #{tpu_custom_call.1} parent=1 // pred_check
      %p53 = pneg %p52
    $region15: #{tpu_custom_call.1} parent=1 // pred_check_branch
      %55 = sbr.rel (%p53) target = $region17
    $region16: #{tpu_custom_call.1} parent=1 // pred_region
      %v56 = vld [vmem:[#allocation5] sm:$0x3]
      %v57 = vld [vmem:[#allocation5 + $0x2] sm:$0x3]
      %v58 = vmax.f32 %v56, %v38
      %v59 = vmax.f32 %v57, %v45
      %60 = vst [vmem:[#allocation5] sm:$0x3] %v58
      %61 = vst [vmem:[#allocation5 + $0x2] sm:$0x3] %v59
    $region17: #{tpu_custom_call.1} parent=1 // pred_fallthru
      _
    // Predicated region
    $region18: #{tpu_custom_call.1} parent=1 // pred_check
      _
    $region19: #{tpu_custom_call.1} parent=1 // pred_check_branch
      %63 = sbr.rel (0) target = $region21
    $region20: #{tpu_custom_call.1} parent=1 // pred_region
      %s65 = ssub.s32 64, 64
      %66 = vsyncadd [#allocation4], %s65
      %s67 = sshll.u32 [#allocation5], 4
      %s68 = int_to_ptr.vmem [resolvable:$true] %s67
      %73 = dma.vmem_to_hbm [thread:$0]  %s68, 64, %s1, [#allocation4], 32, 32, 2
    $region21: #{tpu_custom_call.1} parent=1 // pred_fallthru
      _
    // Predicated region
    $region22: #{tpu_custom_call.1} parent=1 // pred_check
      _
    $region23: #{tpu_custom_call.1} parent=1 // pred_check_branch
      %75 = sbr.rel (0) target = $region25
    $region24: #{tpu_custom_call.1} parent=1 // pred_region
      %76 = dma.done [#allocation4], 64
    $region25: #{tpu_custom_call.1} parent=1 // pred_fallthru
      _
    %77 = vsyncpa [#allocation3], 1
    %78 = vsyncpa [#allocation4], 1

</llo_original>
